<compile_context>
chip_gen: v7x
topology: tpu7x:2x2x1
jax: 0.10.0
libtpu: 0.0.40
codegen_flags: <defaults>
</compile_context>

<pallas_src>
import math

import jax
import jax.numpy as jnp
from jax.experimental import pallas as pl
from jax.experimental.pallas import tpu as pltpu

K_IN = 1 * 28 * 28          # 784
K_PAD = 896                 # 7 * 128 (lane-aligned contraction dim)
H1, H2 = 256, 128
H3 = 64
H3_PAD = 128                # lane-dense hidden-3 width (zero-padded)
OUT = 10
OUT_PAD = 128               # lane-dense output width (zero-padded)


def _round_up(v, m):
    return ((v + m - 1) // m) * m


def _mlp_kernel(x_ref,
                w1_ref, b1_ref,
                w2_ref, b2_ref,
                w3_ref, b3_ref,
                w4_ref, b4_ref,
                o_ref):
    """Fused 4-layer MLP forward for one (TILE_B, K_PAD) batch tile."""
    x = x_ref[...]                                                       # (TB, 896) bf16

    h1 = jnp.dot(x, w1_ref[...], preferred_element_type=jnp.float32) + b1_ref[...]
    h1 = jnp.maximum(h1, 0.0).astype(jnp.bfloat16)                       # (TB, 256)

    h2 = jnp.dot(h1, w2_ref[...], preferred_element_type=jnp.float32) + b2_ref[...]
    h2 = jnp.maximum(h2, 0.0).astype(jnp.bfloat16)                       # (TB, 128)

    h3 = jnp.dot(h2, w3_ref[...], preferred_element_type=jnp.float32) + b3_ref[...]
    h3 = jnp.maximum(h3, 0.0).astype(jnp.bfloat16)                       # (TB, 128) padded

    out = jnp.dot(h3, w4_ref[...], preferred_element_type=jnp.float32) + b4_ref[...]
    o_ref[...] = out.astype(o_ref.dtype)                                 # (TB, 128) f32


def mnist_mlp_forward(x_nchw, params):
    """params: w1..w4 with shape (in, out) and b1..b4 with shape (1, out), f32."""
    n = x_nchw.shape[0]
    x = x_nchw.reshape(n, K_IN).astype(jnp.float32)       # == inp.view(-1, 784)

    # Batch tile: multiple of 8 (sublane), up to 512 rows per grid step.
    tile_b = min(512, _round_up(max(n, 1), 8))
    n_pad = _round_up(n, tile_b)

    # Pad batch rows and contraction dim; cast matmul inputs to bf16.
    x_p = jnp.zeros((n_pad, K_PAD), jnp.bfloat16)
    x_p = x_p.at[:n, :K_IN].set(x.astype(jnp.bfloat16))

    w1 = jnp.zeros((K_PAD, H1), jnp.bfloat16).at[:K_IN, :].set(
        params["w1"].astype(jnp.bfloat16))
    w2 = params["w2"].astype(jnp.bfloat16)
    # Pad hidden-3 output columns 64 -> 128 (zeros) and hidden-3 input rows of
    # the last layer 64 -> 128 (zeros): padded lanes produce relu(0)=0 and
    # multiply by zero rows, so results are unchanged.
    w3 = jnp.zeros((H2, H3_PAD), jnp.bfloat16).at[:, :H3].set(
        params["w3"].astype(jnp.bfloat16))
    w4 = jnp.zeros((H3_PAD, OUT_PAD), jnp.bfloat16).at[:H3, :OUT].set(
        params["w4"].astype(jnp.bfloat16))

    b1 = params["b1"].astype(jnp.float32)
    b2 = params["b2"].astype(jnp.float32)
    b3 = jnp.zeros((1, H3_PAD), jnp.float32).at[:, :H3].set(
        params["b3"].astype(jnp.float32))
    b4 = jnp.zeros((1, OUT_PAD), jnp.float32).at[:, :OUT].set(
        params["b4"].astype(jnp.float32))

    grid = (n_pad // tile_b,)

    flops = 2 * n_pad * (K_PAD * H1 + H1 * H2 + H2 * H3_PAD + H3_PAD * OUT_PAD)
    bytes_accessed = (
        n_pad * K_PAD * 2                                           # x (bf16)
        + (K_PAD * H1 + H1 * H2 + H2 * H3_PAD + H3_PAD * OUT_PAD) * 2   # weights
        + (H1 + H2 + H3_PAD + OUT_PAD) * 4                          # biases (f32)
        + n_pad * OUT_PAD * 4                                       # output (f32)
    )

    out_padded = pl.pallas_call(
        _mlp_kernel,
        out_shape=jax.ShapeDtypeStruct((n_pad, OUT_PAD), jnp.float32),
        grid=grid,
        in_specs=[
            pl.BlockSpec((tile_b, K_PAD), lambda i: (i, 0)),   # x: tiled over batch
            pl.BlockSpec((K_PAD, H1),     lambda i: (0, 0)),   # weights/biases resident
            pl.BlockSpec((1, H1),         lambda i: (0, 0)),
            pl.BlockSpec((H1, H2),        lambda i: (0, 0)),
            pl.BlockSpec((1, H2),         lambda i: (0, 0)),
            pl.BlockSpec((H2, H3_PAD),    lambda i: (0, 0)),
            pl.BlockSpec((1, H3_PAD),     lambda i: (0, 0)),
            pl.BlockSpec((H3_PAD, OUT_PAD), lambda i: (0, 0)),
            pl.BlockSpec((1, OUT_PAD),    lambda i: (0, 0)),
        ],
        out_specs=pl.BlockSpec((tile_b, OUT_PAD), lambda i: (i, 0)),
        compiler_params=pltpu.CompilerParams(
            dimension_semantics=("parallel",)),
        cost_estimate=pl.CostEstimate(
            flops=flops, transcendentals=0, bytes_accessed=bytes_accessed),
    )(x_p, w1, b1, w2, b2, w3, b3, w4, b4)

    return out_padded[:n, :OUT]


def init_params(key):
    """Deterministic init mimicking torch.nn.Linear's U(-1/sqrt(fan_in), ...)."""
    dims = [(K_IN, H1), (H1, H2), (H2, H3), (H3, OUT)]
    params = {}
    keys = jax.random.split(key, 2 * len(dims))
    for i, (fan_in, fan_out) in enumerate(dims):
        bound = 1.0 / math.sqrt(fan_in)
        w = jax.random.uniform(keys[2 * i], (fan_in, fan_out),
                               minval=-bound, maxval=bound, dtype=jnp.float32)
        b = jax.random.uniform(keys[2 * i + 1], (1, fan_out),
                               minval=-bound, maxval=bound, dtype=jnp.float32)
        params[f"w{i + 1}"] = w
        params[f"b{i + 1}"] = b
    return params


def reference_forward(x_nchw, params):
    """Pure-JAX reference mirroring the kernel's bf16-input / f32-accumulate math."""
    def bf(a):
        return a.astype(jnp.bfloat16).astype(jnp.float32)

    n = x_nchw.shape[0]
    h = bf(x_nchw.reshape(n, K_IN).astype(jnp.float32))
    h = bf(jnp.maximum(h @ bf(params["w1"]) + params["b1"], 0.0))
    h = bf(jnp.maximum(h @ bf(params["w2"]) + params["b2"], 0.0))
    h = bf(jnp.maximum(h @ bf(params["w3"]) + params["b3"], 0.0))
    return h @ bf(params["w4"]) + params["b4"]


if __name__ == "__main__":
    key = jax.random.PRNGKey(0)
    k_params, k_x = jax.random.split(key)

    params = init_params(k_params)
    # MNIST-shaped input: batch=2, NCHW (2, 1, 28, 28)
    x = jax.random.normal(k_x, (2, 1, 28, 28), dtype=jnp.float32)

    out = mnist_mlp_forward(x, params)
    out = jax.block_until_ready(out)

    ref = reference_forward(x, params)
    assert out.shape == (2, 10), out.shape
    assert jnp.allclose(out, ref, atol=5e-3, rtol=5e-3), "mismatch vs reference"

    print("KERNEL_OK")
</pallas_src>

<mosaic_0001>
module attributes {stable_mosaic.version = 11 : i64} {
  func.func @_mlp_kernel(%arg0: i32, %arg1: memref<8x896xbf16, #tpu.memory_space<vmem>>, %arg2: memref<896x256xbf16, #tpu.memory_space<vmem>>, %arg3: memref<1x256xf32, #tpu.memory_space<vmem>>, %arg4: memref<256x128xbf16, #tpu.memory_space<vmem>>, %arg5: memref<1x128xf32, #tpu.memory_space<vmem>>, %arg6: memref<128x128xbf16, #tpu.memory_space<vmem>>, %arg7: memref<1x128xf32, #tpu.memory_space<vmem>>, %arg8: memref<128x128xbf16, #tpu.memory_space<vmem>>, %arg9: memref<1x128xf32, #tpu.memory_space<vmem>>, %arg10: memref<8x128xf32, #tpu.memory_space<vmem>>) attributes {dimension_semantics = [#tpu.dimension_semantics<parallel>], iteration_bounds = array<i64: 1>, scalar_prefetch = 0 : i64, scratch_operands = 0 : i64, tpu.core_type = #tpu.core_type<tc>, window_params = [{transform_indices = @transform_0, window_bounds = array<i64: 8, 896>}, {pipeline_mode = #tpu.pipeline_mode<synchronous>, transform_indices = @transform_1, window_bounds = array<i64: 896, 256>}, {pipeline_mode = #tpu.pipeline_mode<synchronous>, transform_indices = @transform_2, window_bounds = array<i64: 1, 256>}, {pipeline_mode = #tpu.pipeline_mode<synchronous>, transform_indices = @transform_3, window_bounds = array<i64: 256, 128>}, {pipeline_mode = #tpu.pipeline_mode<synchronous>, transform_indices = @transform_4, window_bounds = array<i64: 1, 128>}, {pipeline_mode = #tpu.pipeline_mode<synchronous>, transform_indices = @transform_5, window_bounds = array<i64: 128, 128>}, {pipeline_mode = #tpu.pipeline_mode<synchronous>, transform_indices = @transform_6, window_bounds = array<i64: 1, 128>}, {pipeline_mode = #tpu.pipeline_mode<synchronous>, transform_indices = @transform_7, window_bounds = array<i64: 128, 128>}, {pipeline_mode = #tpu.pipeline_mode<synchronous>, transform_indices = @transform_8, window_bounds = array<i64: 1, 128>}, {transform_indices = @transform_9, window_bounds = array<i64: 8, 128>}]} {
    %c0 = arith.constant 0 : index
    %c0_0 = arith.constant 0 : index
    %0 = vector.load %arg1[%c0, %c0_0] : memref<8x896xbf16, #tpu.memory_space<vmem>>, vector<8x896xbf16>
    %c0_1 = arith.constant 0 : index
    %c0_2 = arith.constant 0 : index
    %1 = vector.load %arg2[%c0_1, %c0_2] : memref<896x256xbf16, #tpu.memory_space<vmem>>, vector<896x256xbf16>
    %cst = arith.constant dense<0.000000e+00> : vector<8x256xf32>
    %2 = tpu.matmul %0, %1, %cst {dimension_numbers = #tpu.dot_dimension_numbers<[1], [0], [0], [1], [0, 0, 1, 1], [], []>} : vector<8x896xbf16>, vector<896x256xbf16>, vector<8x256xf32> -> vector<8x256xf32>
    %c0_3 = arith.constant 0 : index
    %c0_4 = arith.constant 0 : index
    %3 = vector.load %arg3[%c0_3, %c0_4] : memref<1x256xf32, #tpu.memory_space<vmem>>, vector<1x256xf32>
    %4 = vector.broadcast %3 : vector<1x256xf32> to vector<8x256xf32>
    %5 = arith.addf %2, %4 : vector<8x256xf32>
    %cst_5 = arith.constant 0.000000e+00 : f32
    %6 = vector.broadcast %cst_5 : f32 to vector<8x256xf32>
    %7 = arith.maximumf %5, %6 : vector<8x256xf32>
    %8 = arith.truncf %7 : vector<8x256xf32> to vector<8x256xbf16>
    %c0_6 = arith.constant 0 : index
    %c0_7 = arith.constant 0 : index
    %9 = vector.load %arg4[%c0_6, %c0_7] : memref<256x128xbf16, #tpu.memory_space<vmem>>, vector<256x128xbf16>
    %cst_8 = arith.constant dense<0.000000e+00> : vector<8x128xf32>
    %10 = tpu.matmul %8, %9, %cst_8 {dimension_numbers = #tpu.dot_dimension_numbers<[1], [0], [0], [1], [0, 0, 1, 1], [], []>} : vector<8x256xbf16>, vector<256x128xbf16>, vector<8x128xf32> -> vector<8x128xf32>
    %c0_9 = arith.constant 0 : index
    %c0_10 = arith.constant 0 : index
    %11 = vector.load %arg5[%c0_9, %c0_10] : memref<1x128xf32, #tpu.memory_space<vmem>>, vector<1x128xf32>
    %12 = vector.broadcast %11 : vector<1x128xf32> to vector<8x128xf32>
    %13 = arith.addf %10, %12 : vector<8x128xf32>
    %cst_11 = arith.constant 0.000000e+00 : f32
    %14 = vector.broadcast %cst_11 : f32 to vector<8x128xf32>
    %15 = arith.maximumf %13, %14 : vector<8x128xf32>
    %16 = arith.truncf %15 : vector<8x128xf32> to vector<8x128xbf16>
    %c0_12 = arith.constant 0 : index
    %c0_13 = arith.constant 0 : index
    %17 = vector.load %arg6[%c0_12, %c0_13] : memref<128x128xbf16, #tpu.memory_space<vmem>>, vector<128x128xbf16>
    %cst_14 = arith.constant dense<0.000000e+00> : vector<8x128xf32>
    %18 = tpu.matmul %16, %17, %cst_14 {dimension_numbers = #tpu.dot_dimension_numbers<[1], [0], [0], [1], [0, 0, 1, 1], [], []>} : vector<8x128xbf16>, vector<128x128xbf16>, vector<8x128xf32> -> vector<8x128xf32>
    %c0_15 = arith.constant 0 : index
    %c0_16 = arith.constant 0 : index
    %19 = vector.load %arg7[%c0_15, %c0_16] : memref<1x128xf32, #tpu.memory_space<vmem>>, vector<1x128xf32>
    %20 = vector.broadcast %19 : vector<1x128xf32> to vector<8x128xf32>
    %21 = arith.addf %18, %20 : vector<8x128xf32>
    %cst_17 = arith.constant 0.000000e+00 : f32
    %22 = vector.broadcast %cst_17 : f32 to vector<8x128xf32>
    %23 = arith.maximumf %21, %22 : vector<8x128xf32>
    %24 = arith.truncf %23 : vector<8x128xf32> to vector<8x128xbf16>
    %c0_18 = arith.constant 0 : index
    %c0_19 = arith.constant 0 : index
    %25 = vector.load %arg8[%c0_18, %c0_19] : memref<128x128xbf16, #tpu.memory_space<vmem>>, vector<128x128xbf16>
    %cst_20 = arith.constant dense<0.000000e+00> : vector<8x128xf32>
    %26 = tpu.matmul %24, %25, %cst_20 {dimension_numbers = #tpu.dot_dimension_numbers<[1], [0], [0], [1], [0, 0, 1, 1], [], []>} : vector<8x128xbf16>, vector<128x128xbf16>, vector<8x128xf32> -> vector<8x128xf32>
    %c0_21 = arith.constant 0 : index
    %c0_22 = arith.constant 0 : index
    %27 = vector.load %arg9[%c0_21, %c0_22] : memref<1x128xf32, #tpu.memory_space<vmem>>, vector<1x128xf32>
    %28 = vector.broadcast %27 : vector<1x128xf32> to vector<8x128xf32>
    %29 = arith.addf %26, %28 : vector<8x128xf32>
    %c0_23 = arith.constant 0 : index
    %c0_24 = arith.constant 0 : index
    %30 = vector.load %arg10[%c0_23, %c0_24] : memref<8x128xf32, #tpu.memory_space<vmem>>, vector<8x128xf32>
    tpu.vector_store %arg10[%c0_23, %c0_24], %29 {strides = array<i32>} : memref<8x128xf32, #tpu.memory_space<vmem>>, vector<8x128xf32>,
    return
  }
  func.func @transform_0(%arg0: i32) -> (i32, i32) {
    %c0_i32 = arith.constant 0 : i32
    %c0_i32_0 = arith.constant 0 : i32
    return %arg0, %c0_i32 : i32, i32
  }
  func.func @transform_1(%arg0: i32) -> (i32, i32) {
    %c0_i32 = arith.constant 0 : i32
    %c0_i32_0 = arith.constant 0 : i32
    %c0_i32_1 = arith.constant 0 : i32
    return %c0_i32, %c0_i32_0 : i32, i32
  }
  func.func @transform_2(%arg0: i32) -> (i32, i32) {
    %c0_i32 = arith.constant 0 : i32
    %c0_i32_0 = arith.constant 0 : i32
    %c0_i32_1 = arith.constant 0 : i32
    return %c0_i32, %c0_i32_0 : i32, i32
  }
  func.func @transform_3(%arg0: i32) -> (i32, i32) {
    %c0_i32 = arith.constant 0 : i32
    %c0_i32_0 = arith.constant 0 : i32
    %c0_i32_1 = arith.constant 0 : i32
    return %c0_i32, %c0_i32_0 : i32, i32
  }
  func.func @transform_4(%arg0: i32) -> (i32, i32) {
    %c0_i32 = arith.constant 0 : i32
    %c0_i32_0 = arith.constant 0 : i32
    %c0_i32_1 = arith.constant 0 : i32
    return %c0_i32, %c0_i32_0 : i32, i32
  }
  func.func @transform_5(%arg0: i32) -> (i32, i32) {
    %c0_i32 = arith.constant 0 : i32
    %c0_i32_0 = arith.constant 0 : i32
    %c0_i32_1 = arith.constant 0 : i32
    return %c0_i32, %c0_i32_0 : i32, i32
  }
  func.func @transform_6(%arg0: i32) -> (i32, i32) {
    %c0_i32 = arith.constant 0 : i32
    %c0_i32_0 = arith.constant 0 : i32
    %c0_i32_1 = arith.constant 0 : i32
    return %c0_i32, %c0_i32_0 : i32, i32
  }
  func.func @transform_7(%arg0: i32) -> (i32, i32) {
    %c0_i32 = arith.constant 0 : i32
    %c0_i32_0 = arith.constant 0 : i32
    %c0_i32_1 = arith.constant 0 : i32
    return %c0_i32, %c0_i32_0 : i32, i32
  }
  func.func @transform_8(%arg0: i32) -> (i32, i32) {
    %c0_i32 = arith.constant 0 : i32
    %c0_i32_0 = arith.constant 0 : i32
    %c0_i32_1 = arith.constant 0 : i32
    return %c0_i32, %c0_i32_0 : i32, i32
  }
  func.func @transform_9(%arg0: i32) -> (i32, i32) {
    %c0_i32 = arith.constant 0 : i32
    %c0_i32_0 = arith.constant 0 : i32
    return %arg0, %c0_i32 : i32, i32
  }
}

</mosaic_0001>

<llo_original>
// kernel: tpu_custom_call.1
$region0: #{tpu_custom_call.1}
  #allocation0 [shape = 'u32[]', space=smem, size = 0x4, offset = 0x4, fixed_abs, tag = 'smem constant byte address 0x4 - core index']
  #allocation1 [shape = 'u32[144,128]{1,0:T(1,128)}', space=vmem, size = 0x12000, scoped, tag = 'internal scratch']
  %s0 = inlined_call_operand.hbm [shape: bf16[8,896], index: 0, kind: input, shape index: {}]
  %s1 = inlined_call_operand.hbm [shape: bf16[896,256], index: 1, kind: input, shape index: {}]
  %s2 = inlined_call_operand.vmem [shape: f32[1,256], index: 2, kind: input, shape index: {}]
  %s3 = inlined_call_operand.hbm [shape: bf16[256,128], index: 3, kind: input, shape index: {}]
  %s4 = inlined_call_operand.vmem [shape: f32[1,128], index: 4, kind: input, shape index: {}]
  %s5 = inlined_call_operand.hbm [shape: bf16[128,128], index: 5, kind: input, shape index: {}]
  %s6 = inlined_call_operand.vmem [shape: f32[1,128], index: 6, kind: input, shape index: {}]
  %s7 = inlined_call_operand.hbm [shape: bf16[128,128], index: 7, kind: input, shape index: {}]
  %s8 = inlined_call_operand.vmem [shape: f32[1,128], index: 8, kind: input, shape index: {}]
  %s9 = inlined_call_operand.hbm [shape: f32[8,128], index: 9, kind: output, shape index: {}]
  %s10 = sld [smem:[#allocation0]]
  $region66: #{tpu_custom_call.1} parent=0
    _
  %s12 = ssub.s32 1, %s10
  %s13 = scalar_select 0, %s12, %s10
  $region1: #{tpu_custom_call.1} parent=0
    #allocation2 [shape = 'u8[14336]{0}', space=vmem, size = 0x3800, scoped, tag = 'input window, operand 0, single buffered']
    #allocation3 [shape = 's32[1]{0}', space=sflag, size = 0x4, scoped, tag = 'scoped memory for tpu_custom_call.1']
    #allocation4 [shape = 's32[1]{0}', space=sflag, size = 0x4, scoped, tag = 'scoped memory for tpu_custom_call.1']
    #allocation5 [shape = 'u8[458752]{0}', space=vmem, size = 0x70000, scoped, tag = 'input window, operand 1, single buffered']
    #allocation6 [shape = 's32[1]{0}', space=sflag, size = 0x4, scoped, tag = 'scoped memory for tpu_custom_call.1']
    #allocation7 [shape = 'u8[65536]{0}', space=vmem, size = 0x10000, scoped, tag = 'input window, operand 3, single buffered']
    #allocation8 [shape = 'u8[32768]{0}', space=vmem, size = 0x8000, scoped, tag = 'input window, operand 5, single buffered']
    #allocation9 [shape = 's32[1]{0}', space=sflag, size = 0x4, scoped, tag = 'scoped memory for tpu_custom_call.1']
    #allocation10 [shape = 'u8[32768]{0}', space=vmem, size = 0x8000, scoped, tag = 'input window, operand 7, single buffered']
    #allocation11 [shape = 'u8[4096]{0}', space=vmem, size = 0x1000, scoped, tag = 'output window, operand 0, single buffered']
    %14 = vsyncpa [#allocation3], 0
    %15 = vsyncpa [#allocation6], 0
    %16 = vsyncpa [#allocation9], 0
    %17 = vsyncpa [#allocation4], 0
    // Predicated region
    $region2: #{tpu_custom_call.1} parent=1 // pred_check
      _
    $region3: #{tpu_custom_call.1} parent=1 // pred_check_branch
      %19 = sbr.rel (0) target = $region5
    $region4: #{tpu_custom_call.1} parent=1 // pred_region
      %s21 = ssub.s32 448, 448
      %22 = vsyncadd [#allocation3], %s21
      %s24 = sshll.u32 [#allocation2], 4
      %s25 = int_to_ptr.vmem [resolvable:$true] %s24
      %27 = dma.hbm_to_vmem [thread:$0]  %s0, 448, %s25, [#allocation3]
    $region5: #{tpu_custom_call.1} parent=1 // pred_fallthru
      _
    // Predicated region
    $region6: #{tpu_custom_call.1} parent=1 // pred_check
      _
    $region7: #{tpu_custom_call.1} parent=1 // pred_check_branch
      %29 = sbr.rel (0) target = $region9
    $region8: #{tpu_custom_call.1} parent=1 // pred_region
      %s31 = ssub.s32 14336, 14336
      %32 = vsyncadd [#allocation6], %s31
      %s33 = sshll.u32 [#allocation5], 4
      %s34 = int_to_ptr.vmem [resolvable:$true] %s33
      %39 = dma.hbm_to_vmem [thread:$0]  %s1, 14336, %s34, [#allocation6], 128, 128, 8
    $region9: #{tpu_custom_call.1} parent=1 // pred_fallthru
      _
    // Predicated region
    $region10: #{tpu_custom_call.1} parent=1 // pred_check
      _
    $region11: #{tpu_custom_call.1} parent=1 // pred_check_branch
      %41 = sbr.rel (0) target = $region13
    $region12: #{tpu_custom_call.1} parent=1 // pred_region
      _
    $region13: #{tpu_custom_call.1} parent=1 // pred_fallthru
      _
    // Predicated region
    $region14: #{tpu_custom_call.1} parent=1 // pred_check
      _
    $region15: #{tpu_custom_call.1} parent=1 // pred_check_branch
      %43 = sbr.rel (0) target = $region17
    $region16: #{tpu_custom_call.1} parent=1 // pred_region
      %s45 = ssub.s32 2048, 2048
      %46 = vsyncadd [#allocation6], %s45
      %s47 = sshll.u32 [#allocation7], 4
      %s48 = int_to_ptr.vmem [resolvable:$true] %s47
      %53 = dma.hbm_to_vmem [thread:$0]  %s3, 2048, %s48, [#allocation6], 64, 64, 4
    $region17: #{tpu_custom_call.1} parent=1 // pred_fallthru
      _
    // Predicated region
    $region18: #{tpu_custom_call.1} parent=1 // pred_check
      _
    $region19: #{tpu_custom_call.1} parent=1 // pred_check_branch
      %55 = sbr.rel (0) target = $region21
    $region20: #{tpu_custom_call.1} parent=1 // pred_region
      _
    $region21: #{tpu_custom_call.1} parent=1 // pred_fallthru
      _
    // Predicated region
    $region22: #{tpu_custom_call.1} parent=1 // pred_check
      _
    $region23: #{tpu_custom_call.1} parent=1 // pred_check_branch
      %57 = sbr.rel (0) target = $region25
    $region24: #{tpu_custom_call.1} parent=1 // pred_region
      %s59 = ssub.s32 1024, 1024
      %60 = vsyncadd [#allocation9], %s59
      %s61 = sshll.u32 [#allocation8], 4
      %s62 = int_to_ptr.vmem [resolvable:$true] %s61
      %67 = dma.hbm_to_vmem [thread:$0]  %s5, 1024, %s62, [#allocation9], 64, 64, 4
    $region25: #{tpu_custom_call.1} parent=1 // pred_fallthru
      _
    // Predicated region
    $region26: #{tpu_custom_call.1} parent=1 // pred_check
      _
    $region27: #{tpu_custom_call.1} parent=1 // pred_check_branch
      %69 = sbr.rel (0) target = $region29
    $region28: #{tpu_custom_call.1} parent=1 // pred_region
      _
    $region29: #{tpu_custom_call.1} parent=1 // pred_fallthru
      _
    // Predicated region
    $region30: #{tpu_custom_call.1} parent=1 // pred_check
      _
    $region31: #{tpu_custom_call.1} parent=1 // pred_check_branch
      %71 = sbr.rel (0) target = $region33
    $region32: #{tpu_custom_call.1} parent=1 // pred_region
      %s73 = ssub.s32 1024, 1024
      %74 = vsyncadd [#allocation9], %s73
      %s75 = sshll.u32 [#allocation10], 4
      %s76 = int_to_ptr.vmem [resolvable:$true] %s75
      %81 = dma.hbm_to_vmem [thread:$0]  %s7, 1024, %s76, [#allocation9], 64, 64, 4
    $region33: #{tpu_custom_call.1} parent=1 // pred_fallthru
      _
    // Predicated region
    $region34: #{tpu_custom_call.1} parent=1 // pred_check
      _
    $region35: #{tpu_custom_call.1} parent=1 // pred_check_branch
      %83 = sbr.rel (0) target = $region37
    $region36: #{tpu_custom_call.1} parent=1 // pred_region
      _
    $region37: #{tpu_custom_call.1} parent=1 // pred_fallthru
      _
    // Predicated region
    $region38: #{tpu_custom_call.1} parent=1 // pred_check
      _
    $region39: #{tpu_custom_call.1} parent=1 // pred_check_branch
      %85 = sbr.rel (0) target = $region41
    $region40: #{tpu_custom_call.1} parent=1 // pred_region
      %86 = dma.done [#allocation3], 448
    $region41: #{tpu_custom_call.1} parent=1 // pred_fallthru
      _
    // Predicated region
    $region42: #{tpu_custom_call.1} parent=1 // pred_check
      _
    $region43: #{tpu_custom_call.1} parent=1 // pred_check_branch
      %88 = sbr.rel (0) target = $region45
    $region44: #{tpu_custom_call.1} parent=1 // pred_region
      %89 = dma.done [#allocation6], 14336
    $region45: #{tpu_custom_call.1} parent=1 // pred_fallthru
      _
    // Predicated region
    $region46: #{tpu_custom_call.1} parent=1 // pred_check
      _
    $region47: #{tpu_custom_call.1} parent=1 // pred_check_branch
      %91 = sbr.rel (0) target = $region49
    $region48: #{tpu_custom_call.1} parent=1 // pred_region
      %92 = dma.done [#allocation6], 2048
    $region49: #{tpu_custom_call.1} parent=1 // pred_fallthru
      _
    // Predicated region
    $region50: #{tpu_custom_call.1} parent=1 // pred_check
      _
    $region51: #{tpu_custom_call.1} parent=1 // pred_check_branch
      %94 = sbr.rel (0) target = $region53
    $region52: #{tpu_custom_call.1} parent=1 // pred_region
      %95 = dma.done [#allocation9], 1024
    $region53: #{tpu_custom_call.1} parent=1 // pred_fallthru
      _
    // Predicated region
    $region54: #{tpu_custom_call.1} parent=1 // pred_check
      _
    $region55: #{tpu_custom_call.1} parent=1 // pred_check_branch
      %97 = sbr.rel (0) target = $region57
    $region56: #{tpu_custom_call.1} parent=1 // pred_region
      %98 = dma.done [#allocation9], 1024
    $region57: #{tpu_custom_call.1} parent=1 // pred_fallthru
      _
    %v100 = vld [vmem:[#allocation2] sm:$0xff]
    %v101 = vld [vmem:[#allocation2 + $0x8] sm:$0xff]
    %v102 = vld [vmem:[#allocation2 + $0x10] sm:$0xff]
    %v103 = vld [vmem:[#allocation2 + $0x18] sm:$0xf]
    %v104 = vld [vmem:[#allocation5] sm:$0xff]
    %v105 = vld [vmem:[#allocation5 + $0x8] sm:$0xff]
    %v106 = vld [vmem:[#allocation5 + $0x10] sm:$0xff]
    %v107 = vld [vmem:[#allocation5 + $0x18] sm:$0xff]
    %v108 = vld [vmem:[#allocation5 + $0x20] sm:$0xff]
    %v109 = vld [vmem:[#allocation5 + $0x28] sm:$0xff]
    %v110 = vld [vmem:[#allocation5 + $0x30] sm:$0xff]
    %v111 = vld [vmem:[#allocation5 + $0x38] sm:$0xff]
    %v112 = vld [vmem:[#allocation5 + $0x40] sm:$0xff]
    %v113 = vld [vmem:[#allocation5 + $0x48] sm:$0xff]
    %v114 = vld [vmem:[#allocation5 + $0x50] sm:$0xff]
    %v115 = vld [vmem:[#allocation5 + $0x58] sm:$0xff]
    %v116 = vld [vmem:[#allocation5 + $0x60] sm:$0xff]
    %v117 = vld [vmem:[#allocation5 + $0x68] sm:$0xff]
    %v118 = vld [vmem:[#allocation5 + $0x70] sm:$0xff]
    %v119 = vld [vmem:[#allocation5 + $0x78] sm:$0xff]
    %v120 = vld [vmem:[#allocation5 + $0x80] sm:$0xff]
    %v121 = vld [vmem:[#allocation5 + $0x88] sm:$0xff]
    %v122 = vld [vmem:[#allocation5 + $0x90] sm:$0xff]
    %v123 = vld [vmem:[#allocation5 + $0x98] sm:$0xff]
    %v124 = vld [vmem:[#allocation5 + $0xa0] sm:$0xff]
    %v125 = vld [vmem:[#allocation5 + $0xa8] sm:$0xff]
    %v126 = vld [vmem:[#allocation5 + $0xb0] sm:$0xff]
    %v127 = vld [vmem:[#allocation5 + $0xb8] sm:$0xff]
    %v128 = vld [vmem:[#allocation5 + $0xc0] sm:$0xff]
    %v129 = vld [vmem:[#allocation5 + $0xc8] sm:$0xff]
    %v130 = vld [vmem:[#allocation5 + $0xd0] sm:$0xff]
    %v131 = vld [vmem:[#allocation5 + $0xd8] sm:$0xff]
    %v132 = vld [vmem:[#allocation5 + $0xe0] sm:$0xff]
    %v133 = vld [vmem:[#allocation5 + $0xe8] sm:$0xff]
    %v134 = vld [vmem:[#allocation5 + $0xf0] sm:$0xff]
    %v135 = vld [vmem:[#allocation5 + $0xf8] sm:$0xff]
    %v136 = vld [vmem:[#allocation5 + $0x100] sm:$0xff]
    %v137 = vld [vmem:[#allocation5 + $0x108] sm:$0xff]
    %v138 = vld [vmem:[#allocation5 + $0x110] sm:$0xff]
    %v139 = vld [vmem:[#allocation5 + $0x118] sm:$0xff]
    %v140 = vld [vmem:[#allocation5 + $0x120] sm:$0xff]
    %v141 = vld [vmem:[#allocation5 + $0x128] sm:$0xff]
    %v142 = vld [vmem:[#allocation5 + $0x130] sm:$0xff]
    %v143 = vld [vmem:[#allocation5 + $0x138] sm:$0xff]
    %v144 = vld [vmem:[#allocation5 + $0x140] sm:$0xff]
    %v145 = vld [vmem:[#allocation5 + $0x148] sm:$0xff]
    %v146 = vld [vmem:[#allocation5 + $0x150] sm:$0xff]
    %v147 = vld [vmem:[#allocation5 + $0x158] sm:$0xff]
    %v148 = vld [vmem:[#allocation5 + $0x160] sm:$0xff]
    %v149 = vld [vmem:[#allocation5 + $0x168] sm:$0xff]
    %v150 = vld [vmem:[#allocation5 + $0x170] sm:$0xff]
    %v151 = vld [vmem:[#allocation5 + $0x178] sm:$0xff]
    %v152 = vld [vmem:[#allocation5 + $0x180] sm:$0xff]
    %v153 = vld [vmem:[#allocation5 + $0x188] sm:$0xff]
    %v154 = vld [vmem:[#allocation5 + $0x190] sm:$0xff]
    %v155 = vld [vmem:[#allocation5 + $0x198] sm:$0xff]
    %v156 = vld [vmem:[#allocation5 + $0x1a0] sm:$0xff]
    %v157 = vld [vmem:[#allocation5 + $0x1a8] sm:$0xff]
    %v158 = vld [vmem:[#allocation5 + $0x1b0] sm:$0xff]
    %v159 = vld [vmem:[#allocation5 + $0x1b8] sm:$0xff]
    %v160 = vld [vmem:[#allocation5 + $0x1c0] sm:$0xff]
    %v161 = vld [vmem:[#allocation5 + $0x1c8] sm:$0xff]
    %v162 = vld [vmem:[#allocation5 + $0x1d0] sm:$0xff]
    %v163 = vld [vmem:[#allocation5 + $0x1d8] sm:$0xff]
    %v164 = vld [vmem:[#allocation5 + $0x1e0] sm:$0xff]
    %v165 = vld [vmem:[#allocation5 + $0x1e8] sm:$0xff]
    %v166 = vld [vmem:[#allocation5 + $0x1f0] sm:$0xff]
    %v167 = vld [vmem:[#allocation5 + $0x1f8] sm:$0xff]
    %v168 = vld [vmem:[#allocation5 + $0x200] sm:$0xff]
    %v169 = vld [vmem:[#allocation5 + $0x208] sm:$0xff]
    %v170 = vld [vmem:[#allocation5 + $0x210] sm:$0xff]
    %v171 = vld [vmem:[#allocation5 + $0x218] sm:$0xff]
    %v172 = vld [vmem:[#allocation5 + $0x220] sm:$0xff]
    %v173 = vld [vmem:[#allocation5 + $0x228] sm:$0xff]
    %v174 = vld [vmem:[#allocation5 + $0x230] sm:$0xff]
    %v175 = vld [vmem:[#allocation5 + $0x238] sm:$0xff]
    %v176 = vld [vmem:[#allocation5 + $0x240] sm:$0xff]
    %v177 = vld [vmem:[#allocation5 + $0x248] sm:$0xff]
    %v178 = vld [vmem:[#allocation5 + $0x250] sm:$0xff]
    %v179 = vld [vmem:[#allocation5 + $0x258] sm:$0xff]
    %v180 = vld [vmem:[#allocation5 + $0x260] sm:$0xff]
    %v181 = vld [vmem:[#allocation5 + $0x268] sm:$0xff]
    %v182 = vld [vmem:[#allocation5 + $0x270] sm:$0xff]
    %v183 = vld [vmem:[#allocation5 + $0x278] sm:$0xff]
    %v184 = vld [vmem:[#allocation5 + $0x280] sm:$0xff]
    %v185 = vld [vmem:[#allocation5 + $0x288] sm:$0xff]
    %v186 = vld [vmem:[#allocation5 + $0x290] sm:$0xff]
    %v187 = vld [vmem:[#allocation5 + $0x298] sm:$0xff]
    %v188 = vld [vmem:[#allocation5 + $0x2a0] sm:$0xff]
    %v189 = vld [vmem:[#allocation5 + $0x2a8] sm:$0xff]
    %v190 = vld [vmem:[#allocation5 + $0x2b0] sm:$0xff]
    %v191 = vld [vmem:[#allocation5 + $0x2b8] sm:$0xff]
    %v192 = vld [vmem:[#allocation5 + $0x2c0] sm:$0xff]
    %v193 = vld [vmem:[#allocation5 + $0x2c8] sm:$0xff]
    %v194 = vld [vmem:[#allocation5 + $0x2d0] sm:$0xff]
    %v195 = vld [vmem:[#allocation5 + $0x2d8] sm:$0xff]
    %v196 = vld [vmem:[#allocation5 + $0x2e0] sm:$0xff]
    %v197 = vld [vmem:[#allocation5 + $0x2e8] sm:$0xff]
    %v198 = vld [vmem:[#allocation5 + $0x2f0] sm:$0xff]
    %v199 = vld [vmem:[#allocation5 + $0x2f8] sm:$0xff]
    %v200 = vld [vmem:[#allocation5 + $0x300] sm:$0xff]
    %v201 = vld [vmem:[#allocation5 + $0x308] sm:$0xff]
    %v202 = vld [vmem:[#allocation5 + $0x310] sm:$0xff]
    %v203 = vld [vmem:[#allocation5 + $0x318] sm:$0xff]
    %v204 = vld [vmem:[#allocation5 + $0x320] sm:$0xff]
    %v205 = vld [vmem:[#allocation5 + $0x328] sm:$0xff]
    %v206 = vld [vmem:[#allocation5 + $0x330] sm:$0xff]
    %v207 = vld [vmem:[#allocation5 + $0x338] sm:$0xff]
    %v208 = vld [vmem:[#allocation5 + $0x340] sm:$0xff]
    %v209 = vld [vmem:[#allocation5 + $0x348] sm:$0xff]
    %v210 = vld [vmem:[#allocation5 + $0x350] sm:$0xff]
    %v211 = vld [vmem:[#allocation5 + $0x358] sm:$0xff]
    %v212 = vld [vmem:[#allocation5 + $0x360] sm:$0xff]
    %v213 = vld [vmem:[#allocation5 + $0x368] sm:$0xff]
    %v214 = vld [vmem:[#allocation5 + $0x370] sm:$0xff]
    %v215 = vld [vmem:[#allocation5 + $0x378] sm:$0xff]
    %v216 = vld [vmem:[%s2] sm:$0x3]
    %v218 = vlaneseq
    %v219 = vshrl.u32 %v218, 7
    %v220 = vsub.s32 0, %v219
    %v221 = vrot.slane %v216, %v220
    %v222 = vlaneseq
    %v223 = vshrl.u32 %v222, 7
    %v224 = vsub.s32 1, %v223
    %v225 = vrot.slane %v216, %v224
    %v232 = vunpack.c.l.b16 %v100
    %v233 = vunpack.c.h.b16 %v100
    %v234 = vunpack.c.l.b16 %v101
    %v235 = vunpack.c.h.b16 %v101
    %v236 = vunpack.c.l.b16 %v102
    %v237 = vunpack.c.h.b16 %v102
    %v238 = vunpack.c.l.b16 %v103
    %v239 = vpack.c.b16 %v232, %v232
    %v240 = vpack.c.b16 %v233, %v233
    %v241 = vpack.c.b16 %v234, %v234
    %v242 = vpack.c.b16 %v235, %v235
    %v243 = vpack.c.b16 %v236, %v236
    %v244 = vpack.c.b16 %v237, %v237
    %v245 = vpack.c.b16 %v238, %v238
    %v365 = vunpack.c.l.b16 %v104
    %v366 = vunpack.c.h.b16 %v104
    %v367 = vunpack.c.l.b16 %v105
    %v368 = vunpack.c.h.b16 %v105
    %v369 = vunpack.c.l.b16 %v106
    %v370 = vunpack.c.h.b16 %v106
    %v371 = vunpack.c.l.b16 %v107
    %v372 = vunpack.c.h.b16 %v107
    %v373 = vunpack.c.l.b16 %v108
    %v374 = vunpack.c.h.b16 %v108
    %v375 = vunpack.c.l.b16 %v109
    %v376 = vunpack.c.h.b16 %v109
    %v377 = vunpack.c.l.b16 %v110
    %v378 = vunpack.c.h.b16 %v110
    %v379 = vunpack.c.l.b16 %v111
    %v380 = vunpack.c.h.b16 %v111
    %v381 = vunpack.c.l.b16 %v112
    %v382 = vunpack.c.h.b16 %v112
    %v383 = vunpack.c.l.b16 %v113
    %v384 = vunpack.c.h.b16 %v113
    %v385 = vunpack.c.l.b16 %v114
    %v386 = vunpack.c.h.b16 %v114
    %v387 = vunpack.c.l.b16 %v115
    %v388 = vunpack.c.h.b16 %v115
    %v389 = vunpack.c.l.b16 %v116
    %v390 = vunpack.c.h.b16 %v116
    %v391 = vunpack.c.l.b16 %v117
    %v392 = vunpack.c.h.b16 %v117
    %v393 = vunpack.c.l.b16 %v118
    %v394 = vunpack.c.h.b16 %v118
    %v395 = vunpack.c.l.b16 %v119
    %v396 = vunpack.c.h.b16 %v119
    %v397 = vunpack.c.l.b16 %v120
    %v398 = vunpack.c.h.b16 %v120
    %v399 = vunpack.c.l.b16 %v121
    %v400 = vunpack.c.h.b16 %v121
    %v401 = vunpack.c.l.b16 %v122
    %v402 = vunpack.c.h.b16 %v122
    %v403 = vunpack.c.l.b16 %v123
    %v404 = vunpack.c.h.b16 %v123
    %v405 = vunpack.c.l.b16 %v124
    %v406 = vunpack.c.h.b16 %v124
    %v407 = vunpack.c.l.b16 %v125
    %v408 = vunpack.c.h.b16 %v125
    %v409 = vunpack.c.l.b16 %v126
    %v410 = vunpack.c.h.b16 %v126
    %v411 = vunpack.c.l.b16 %v127
    %v412 = vunpack.c.h.b16 %v127
    %v413 = vunpack.c.l.b16 %v128
    %v414 = vunpack.c.h.b16 %v128
    %v415 = vunpack.c.l.b16 %v129
    %v416 = vunpack.c.h.b16 %v129
    %v417 = vunpack.c.l.b16 %v130
    %v418 = vunpack.c.h.b16 %v130
    %v419 = vunpack.c.l.b16 %v131
    %v420 = vunpack.c.h.b16 %v131
    %v421 = vunpack.c.l.b16 %v132
    %v422 = vunpack.c.h.b16 %v132
    %v423 = vunpack.c.l.b16 %v133
    %v424 = vunpack.c.h.b16 %v133
    %v425 = vunpack.c.l.b16 %v134
    %v426 = vunpack.c.h.b16 %v134
    %v427 = vunpack.c.l.b16 %v135
    %v428 = vunpack.c.h.b16 %v135
    %v429 = vunpack.c.l.b16 %v136
    %v430 = vunpack.c.h.b16 %v136
    %v431 = vunpack.c.l.b16 %v137
    %v432 = vunpack.c.h.b16 %v137
    %v433 = vunpack.c.l.b16 %v138
    %v434 = vunpack.c.h.b16 %v138
    %v435 = vunpack.c.l.b16 %v139
    %v436 = vunpack.c.h.b16 %v139
    %v437 = vunpack.c.l.b16 %v140
    %v438 = vunpack.c.h.b16 %v140
    %v439 = vunpack.c.l.b16 %v141
    %v440 = vunpack.c.h.b16 %v141
    %v441 = vunpack.c.l.b16 %v142
    %v442 = vunpack.c.h.b16 %v142
    %v443 = vunpack.c.l.b16 %v143
    %v444 = vunpack.c.h.b16 %v143
    %v445 = vunpack.c.l.b16 %v144
    %v446 = vunpack.c.h.b16 %v144
    %v447 = vunpack.c.l.b16 %v145
    %v448 = vunpack.c.h.b16 %v145
    %v449 = vunpack.c.l.b16 %v146
    %v450 = vunpack.c.h.b16 %v146
    %v451 = vunpack.c.l.b16 %v147
    %v452 = vunpack.c.h.b16 %v147
    %v453 = vunpack.c.l.b16 %v148
    %v454 = vunpack.c.h.b16 %v148
    %v455 = vunpack.c.l.b16 %v149
    %v456 = vunpack.c.h.b16 %v149
    %v457 = vunpack.c.l.b16 %v150
    %v458 = vunpack.c.h.b16 %v150
    %v459 = vunpack.c.l.b16 %v151
    %v460 = vunpack.c.h.b16 %v151
    %v461 = vunpack.c.l.b16 %v152
    %v462 = vunpack.c.h.b16 %v152
    %v463 = vunpack.c.l.b16 %v153
    %v464 = vunpack.c.h.b16 %v153
    %v465 = vunpack.c.l.b16 %v154
    %v466 = vunpack.c.h.b16 %v154
    %v467 = vunpack.c.l.b16 %v155
    %v468 = vunpack.c.h.b16 %v155
    %v469 = vunpack.c.l.b16 %v156
    %v470 = vunpack.c.h.b16 %v156
    %v471 = vunpack.c.l.b16 %v157
    %v472 = vunpack.c.h.b16 %v157
    %v473 = vunpack.c.l.b16 %v158
    %v474 = vunpack.c.h.b16 %v158
    %v475 = vunpack.c.l.b16 %v159
    %v476 = vunpack.c.h.b16 %v159
    %v477 = vunpack.c.l.b16 %v160
    %v478 = vunpack.c.h.b16 %v160
    %v479 = vunpack.c.l.b16 %v161
    %v480 = vunpack.c.h.b16 %v161
    %v481 = vunpack.c.l.b16 %v162
    %v482 = vunpack.c.h.b16 %v162
    %v483 = vunpack.c.l.b16 %v163
    %v484 = vunpack.c.h.b16 %v163
    %v485 = vunpack.c.l.b16 %v164
    %v486 = vunpack.c.h.b16 %v164
    %v487 = vunpack.c.l.b16 %v165
    %v488 = vunpack.c.h.b16 %v165
    %v489 = vunpack.c.l.b16 %v166
    %v490 = vunpack.c.h.b16 %v166
    %v491 = vunpack.c.l.b16 %v167
    %v492 = vunpack.c.h.b16 %v167
    %v493 = vunpack.c.l.b16 %v168
    %v494 = vunpack.c.h.b16 %v168
    %v495 = vunpack.c.l.b16 %v169
    %v496 = vunpack.c.h.b16 %v169
    %v497 = vunpack.c.l.b16 %v170
    %v498 = vunpack.c.h.b16 %v170
    %v499 = vunpack.c.l.b16 %v171
    %v500 = vunpack.c.h.b16 %v171
    %v501 = vunpack.c.l.b16 %v172
    %v502 = vunpack.c.h.b16 %v172
    %v503 = vunpack.c.l.b16 %v173
    %v504 = vunpack.c.h.b16 %v173
    %v505 = vunpack.c.l.b16 %v174
    %v506 = vunpack.c.h.b16 %v174
    %v507 = vunpack.c.l.b16 %v175
    %v508 = vunpack.c.h.b16 %v175
    %v509 = vunpack.c.l.b16 %v176
    %v510 = vunpack.c.h.b16 %v176
    %v511 = vunpack.c.l.b16 %v177
    %v512 = vunpack.c.h.b16 %v177
    %v513 = vunpack.c.l.b16 %v178
    %v514 = vunpack.c.h.b16 %v178
    %v515 = vunpack.c.l.b16 %v179
    %v516 = vunpack.c.h.b16 %v179
    %v517 = vunpack.c.l.b16 %v180
    %v518 = vunpack.c.h.b16 %v180
    %v519 = vunpack.c.l.b16 %v181
    %v520 = vunpack.c.h.b16 %v181
    %v521 = vunpack.c.l.b16 %v182
    %v522 = vunpack.c.h.b16 %v182
    %v523 = vunpack.c.l.b16 %v183
    %v524 = vunpack.c.h.b16 %v183
    %v525 = vunpack.c.l.b16 %v184
    %v526 = vunpack.c.h.b16 %v184
    %v527 = vunpack.c.l.b16 %v185
    %v528 = vunpack.c.h.b16 %v185
    %v529 = vunpack.c.l.b16 %v186
    %v530 = vunpack.c.h.b16 %v186
    %v531 = vunpack.c.l.b16 %v187
    %v532 = vunpack.c.h.b16 %v187
    %v533 = vunpack.c.l.b16 %v188
    %v534 = vunpack.c.h.b16 %v188
    %v535 = vunpack.c.l.b16 %v189
    %v536 = vunpack.c.h.b16 %v189
    %v537 = vunpack.c.l.b16 %v190
    %v538 = vunpack.c.h.b16 %v190
    %v539 = vunpack.c.l.b16 %v191
    %v540 = vunpack.c.h.b16 %v191
    %v541 = vunpack.c.l.b16 %v192
    %v542 = vunpack.c.h.b16 %v192
    %v543 = vunpack.c.l.b16 %v193
    %v544 = vunpack.c.h.b16 %v193
    %v545 = vunpack.c.l.b16 %v194
    %v546 = vunpack.c.h.b16 %v194
    %v547 = vunpack.c.l.b16 %v195
    %v548 = vunpack.c.h.b16 %v195
    %v549 = vunpack.c.l.b16 %v196
    %v550 = vunpack.c.h.b16 %v196
    %v551 = vunpack.c.l.b16 %v197
    %v552 = vunpack.c.h.b16 %v197
    %v553 = vunpack.c.l.b16 %v198
    %v554 = vunpack.c.h.b16 %v198
    %v555 = vunpack.c.l.b16 %v199
    %v556 = vunpack.c.h.b16 %v199
    %v557 = vunpack.c.l.b16 %v200
    %v558 = vunpack.c.h.b16 %v200
    %v559 = vunpack.c.l.b16 %v201
    %v560 = vunpack.c.h.b16 %v201
    %v561 = vunpack.c.l.b16 %v202
    %v562 = vunpack.c.h.b16 %v202
    %v563 = vunpack.c.l.b16 %v203
    %v564 = vunpack.c.h.b16 %v203
    %v565 = vunpack.c.l.b16 %v204
    %v566 = vunpack.c.h.b16 %v204
    %v567 = vunpack.c.l.b16 %v205
    %v568 = vunpack.c.h.b16 %v205
    %v569 = vunpack.c.l.b16 %v206
    %v570 = vunpack.c.h.b16 %v206
    %v571 = vunpack.c.l.b16 %v207
    %v572 = vunpack.c.h.b16 %v207
    %v573 = vunpack.c.l.b16 %v208
    %v574 = vunpack.c.h.b16 %v208
    %v575 = vunpack.c.l.b16 %v209
    %v576 = vunpack.c.h.b16 %v209
    %v577 = vunpack.c.l.b16 %v210
    %v578 = vunpack.c.h.b16 %v210
    %v579 = vunpack.c.l.b16 %v211
    %v580 = vunpack.c.h.b16 %v211
    %v581 = vunpack.c.l.b16 %v212
    %v582 = vunpack.c.h.b16 %v212
    %v583 = vunpack.c.l.b16 %v213
    %v584 = vunpack.c.h.b16 %v213
    %v585 = vunpack.c.l.b16 %v214
    %v586 = vunpack.c.h.b16 %v214
    %v587 = vunpack.c.l.b16 %v215
    %v588 = vunpack.c.h.b16 %v215
    %v589 = vpack.c.b16 %v367, %v365
    %v590 = vpack.c.b16 %v368, %v366
    %v591 = vpack.c.b16 %v371, %v369
    %v592 = vpack.c.b16 %v372, %v370
    %v593 = vpack.c.b16 %v375, %v373
    %v594 = vpack.c.b16 %v376, %v374
    %v595 = vpack.c.b16 %v379, %v377
    %v596 = vpack.c.b16 %v380, %v378
    %v597 = vpack.c.b16 %v383, %v381
    %v598 = vpack.c.b16 %v384, %v382
    %v599 = vpack.c.b16 %v387, %v385
    %v600 = vpack.c.b16 %v388, %v386
    %v601 = vpack.c.b16 %v391, %v389
    %v602 = vpack.c.b16 %v392, %v390
    %v603 = vpack.c.b16 %v395, %v393
    %v604 = vpack.c.b16 %v396, %v394
    %v605 = vpack.c.b16 %v399, %v397
    %v606 = vpack.c.b16 %v400, %v398
    %v607 = vpack.c.b16 %v403, %v401
    %v608 = vpack.c.b16 %v404, %v402
    %v609 = vpack.c.b16 %v407, %v405
    %v610 = vpack.c.b16 %v408, %v406
    %v611 = vpack.c.b16 %v411, %v409
    %v612 = vpack.c.b16 %v412, %v410
    %v613 = vpack.c.b16 %v415, %v413
    %v614 = vpack.c.b16 %v416, %v414
    %v615 = vpack.c.b16 %v419, %v417
    %v616 = vpack.c.b16 %v420, %v418
    %v617 = vpack.c.b16 %v423, %v421
    %v618 = vpack.c.b16 %v424, %v422
    %v619 = vpack.c.b16 %v427, %v425
    %v620 = vpack.c.b16 %v428, %v426
    %v621 = vpack.c.b16 %v431, %v429
    %v622 = vpack.c.b16 %v432, %v430
    %v623 = vpack.c.b16 %v435, %v433
    %v624 = vpack.c.b16 %v436, %v434
    %v625 = vpack.c.b16 %v439, %v437
    %v626 = vpack.c.b16 %v440, %v438
    %v627 = vpack.c.b16 %v443, %v441
    %v628 = vpack.c.b16 %v444, %v442
    %v629 = vpack.c.b16 %v447, %v445
    %v630 = vpack.c.b16 %v448, %v446
    %v631 = vpack.c.b16 %v451, %v449
    %v632 = vpack.c.b16 %v452, %v450
    %v633 = vpack.c.b16 %v455, %v453
    %v634 = vpack.c.b16 %v456, %v454
    %v635 = vpack.c.b16 %v459, %v457
    %v636 = vpack.c.b16 %v460, %v458
    %v637 = vpack.c.b16 %v463, %v461
    %v638 = vpack.c.b16 %v464, %v462
    %v639 = vpack.c.b16 %v467, %v465
    %v640 = vpack.c.b16 %v468, %v466
    %v641 = vpack.c.b16 %v471, %v469
    %v642 = vpack.c.b16 %v472, %v470
    %v643 = vpack.c.b16 %v475, %v473
    %v644 = vpack.c.b16 %v476, %v474
    %v645 = vpack.c.b16 %v479, %v477
    %v646 = vpack.c.b16 %v480, %v478
    %v647 = vpack.c.b16 %v483, %v481
    %v648 = vpack.c.b16 %v484, %v482
    %v649 = vpack.c.b16 %v487, %v485
    %v650 = vpack.c.b16 %v488, %v486
    %v651 = vpack.c.b16 %v491, %v489
    %v652 = vpack.c.b16 %v492, %v490
    %v653 = vpack.c.b16 %v495, %v493
    %v654 = vpack.c.b16 %v496, %v494
    %v655 = vpack.c.b16 %v499, %v497
    %v656 = vpack.c.b16 %v500, %v498
    %v657 = vpack.c.b16 %v503, %v501
    %v658 = vpack.c.b16 %v504, %v502
    %v659 = vpack.c.b16 %v507, %v505
    %v660 = vpack.c.b16 %v508, %v506
    %v661 = vpack.c.b16 %v511, %v509
    %v662 = vpack.c.b16 %v512, %v510
    %v663 = vpack.c.b16 %v515, %v513
    %v664 = vpack.c.b16 %v516, %v514
    %v665 = vpack.c.b16 %v519, %v517
    %v666 = vpack.c.b16 %v520, %v518
    %v667 = vpack.c.b16 %v523, %v521
    %v668 = vpack.c.b16 %v524, %v522
    %v669 = vpack.c.b16 %v527, %v525
    %v670 = vpack.c.b16 %v528, %v526
    %v671 = vpack.c.b16 %v531, %v529
    %v672 = vpack.c.b16 %v532, %v530
    %v673 = vpack.c.b16 %v535, %v533
    %v674 = vpack.c.b16 %v536, %v534
    %v675 = vpack.c.b16 %v539, %v537
    %v676 = vpack.c.b16 %v540, %v538
    %v677 = vpack.c.b16 %v543, %v541
    %v678 = vpack.c.b16 %v544, %v542
    %v679 = vpack.c.b16 %v547, %v545
    %v680 = vpack.c.b16 %v548, %v546
    %v681 = vpack.c.b16 %v551, %v549
    %v682 = vpack.c.b16 %v552, %v550
    %v683 = vpack.c.b16 %v555, %v553
    %v684 = vpack.c.b16 %v556, %v554
    %v685 = vpack.c.b16 %v559, %v557
    %v686 = vpack.c.b16 %v560, %v558
    %v687 = vpack.c.b16 %v563, %v561
    %v688 = vpack.c.b16 %v564, %v562
    %v689 = vpack.c.b16 %v567, %v565
    %v690 = vpack.c.b16 %v568, %v566
    %v691 = vpack.c.b16 %v571, %v569
    %v692 = vpack.c.b16 %v572, %v570
    %v693 = vpack.c.b16 %v575, %v573
    %v694 = vpack.c.b16 %v576, %v574
    %v695 = vpack.c.b16 %v579, %v577
    %v696 = vpack.c.b16 %v580, %v578
    %v697 = vpack.c.b16 %v583, %v581
    %v698 = vpack.c.b16 %v584, %v582
    %v699 = vpack.c.b16 %v587, %v585
    %v700 = vpack.c.b16 %v588, %v586
    %813 = vmatprep.subr.bf16.mxu0 %v590
    %814 = vmatpush1.bf16.msra.mxu0 %v589
    %815 = vmatprep.subr.bf16.mxu0 %v592
    %816 = vmatpush1.bf16.msra.mxu0 %v591
    %817 = vmatprep.subr.bf16.mxu0 %v594
    %818 = vmatpush1.bf16.msra.mxu0 %v593
    %819 = vmatprep.subr.bf16.mxu0 %v596
    %820 = vmatpush1.bf16.msra.mxu0 %v595
    %821 = vmatprep.subr.bf16.mxu0 %v598
    %822 = vmatpush1.bf16.msra.mxu0 %v597
    %823 = vmatprep.subr.bf16.mxu0 %v600
    %824 = vmatpush1.bf16.msra.mxu0 %v599
    %825 = vmatprep.subr.bf16.mxu0 %v602
    %826 = vmatpush1.bf16.msra.mxu0 %v601
    %827 = vmatprep.subr.bf16.mxu0 %v604
    %828 = vmatpush1.bf16.msra.mxu0 %v603
    %829 = vmatprep.subr.bf16.mxu0 %v606
    %830 = vmatpush1.bf16.msra.mxu0 %v605
    %831 = vmatprep.subr.bf16.mxu0 %v608
    %832 = vmatpush1.bf16.msra.mxu0 %v607
    %833 = vmatprep.subr.bf16.mxu0 %v610
    %834 = vmatpush1.bf16.msra.mxu0 %v609
    %835 = vmatprep.subr.bf16.mxu0 %v612
    %836 = vmatpush1.bf16.msra.mxu0 %v611
    %837 = vmatprep.subr.bf16.mxu0 %v614
    %838 = vmatpush1.bf16.msra.mxu0 %v613
    %839 = vmatprep.subr.bf16.mxu0 %v616
    %840 = vmatpush1.bf16.msra.mxu0 %v615
    %841 = vmatprep.subr.bf16.mxu0 %v618
    %842 = vmatpush1.bf16.msra.mxu0 %v617
    %843 = vmatprep.subr.bf16.mxu0 %v620
    %844 = vmatpush1.bf16.msra.mxu0 %v619
    %845 = vmatprep.mubr.bf16.mxu0 %v240
    %846 = vmatmul.mubr.bf16.gmra.mrb[0].mxu0 %v239
    %v847 = vpop.f32.mrb[0].mxu0
    %v848 = vadd.f32 %v221, %v847
    %v849 = vpop.f32.mrb[0].mxu0
    %v850 = vadd.f32 %v225, %v849
    %v851 = vpop.f32.mrb[0].mxu0
    %v852 = vpop.f32.mrb[0].mxu0
    %853 = vdwg.mxu0
    %854 = vmatprep.subr.bf16.mxu0 %v622
    %855 = vmatpush1.bf16.msra.mxu0 %v621
    %856 = vmatprep.subr.bf16.mxu0 %v624
    %857 = vmatpush1.bf16.msra.mxu0 %v623
    %858 = vmatprep.subr.bf16.mxu0 %v626
    %859 = vmatpush1.bf16.msra.mxu0 %v625
    %860 = vmatprep.subr.bf16.mxu0 %v628
    %861 = vmatpush1.bf16.msra.mxu0 %v627
    %862 = vmatprep.subr.bf16.mxu0 %v630
    %863 = vmatpush1.bf16.msra.mxu0 %v629
    %864 = vmatprep.subr.bf16.mxu0 %v632
    %865 = vmatpush1.bf16.msra.mxu0 %v631
    %866 = vmatprep.subr.bf16.mxu0 %v634
    %867 = vmatpush1.bf16.msra.mxu0 %v633
    %868 = vmatprep.subr.bf16.mxu0 %v636
    %869 = vmatpush1.bf16.msra.mxu0 %v635
    %870 = vmatprep.subr.bf16.mxu0 %v638
    %871 = vmatpush1.bf16.msra.mxu0 %v637
    %872 = vmatprep.subr.bf16.mxu0 %v640
    %873 = vmatpush1.bf16.msra.mxu0 %v639
    %874 = vmatprep.subr.bf16.mxu0 %v642
    %875 = vmatpush1.bf16.msra.mxu0 %v641
    %876 = vmatprep.subr.bf16.mxu0 %v644
    %877 = vmatpush1.bf16.msra.mxu0 %v643
    %878 = vmatprep.subr.bf16.mxu0 %v646
    %879 = vmatpush1.bf16.msra.mxu0 %v645
    %880 = vmatprep.subr.bf16.mxu0 %v648
    %881 = vmatpush1.bf16.msra.mxu0 %v647
    %882 = vmatprep.subr.bf16.mxu0 %v650
    %883 = vmatpush1.bf16.msra.mxu0 %v649
    %884 = vmatprep.subr.bf16.mxu0 %v652
    %885 = vmatpush1.bf16.msra.mxu0 %v651
    %886 = vmatprep.mubr.bf16.mxu0 %v242
    %887 = vmatmul.mubr.bf16.gmra.mrb[0].mxu0 %v241
    %v888 = vpop.f32.mrb[0].mxu0
    %v889 = vadd.f32 %v848, %v888
    %v890 = vpop.f32.mrb[0].mxu0
    %v891 = vadd.f32 %v850, %v890
    %v892 = vpop.f32.mrb[0].mxu0
    %v893 = vpop.f32.mrb[0].mxu0
    %894 = vdwg.mxu0
    %895 = vmatprep.subr.bf16.mxu0 %v654
    %896 = vmatpush1.bf16.msra.mxu0 %v653
    %897 = vmatprep.subr.bf16.mxu0 %v656
    %898 = vmatpush1.bf16.msra.mxu0 %v655
    %899 = vmatprep.subr.bf16.mxu0 %v658
    %900 = vmatpush1.bf16.msra.mxu0 %v657
    %901 = vmatprep.subr.bf16.mxu0 %v660
    %902 = vmatpush1.bf16.msra.mxu0 %v659
    %903 = vmatprep.subr.bf16.mxu0 %v662
    %904 = vmatpush1.bf16.msra.mxu0 %v661
    %905 = vmatprep.subr.bf16.mxu0 %v664
    %906 = vmatpush1.bf16.msra.mxu0 %v663
    %907 = vmatprep.subr.bf16.mxu0 %v666
    %908 = vmatpush1.bf16.msra.mxu0 %v665
    %909 = vmatprep.subr.bf16.mxu0 %v668
    %910 = vmatpush1.bf16.msra.mxu0 %v667
    %911 = vmatprep.subr.bf16.mxu0 %v670
    %912 = vmatpush1.bf16.msra.mxu0 %v669
    %913 = vmatprep.subr.bf16.mxu0 %v672
    %914 = vmatpush1.bf16.msra.mxu0 %v671
    %915 = vmatprep.subr.bf16.mxu0 %v674
    %916 = vmatpush1.bf16.msra.mxu0 %v673
    %917 = vmatprep.subr.bf16.mxu0 %v676
    %918 = vmatpush1.bf16.msra.mxu0 %v675
    %919 = vmatprep.subr.bf16.mxu0 %v678
    %920 = vmatpush1.bf16.msra.mxu0 %v677
    %921 = vmatprep.subr.bf16.mxu0 %v680
    %922 = vmatpush1.bf16.msra.mxu0 %v679
    %923 = vmatprep.subr.bf16.mxu0 %v682
    %924 = vmatpush1.bf16.msra.mxu0 %v681
    %925 = vmatprep.subr.bf16.mxu0 %v684
    %926 = vmatpush1.bf16.msra.mxu0 %v683
    %927 = vmatprep.mubr.bf16.mxu0 %v244
    %928 = vmatmul.mubr.bf16.gmra.mrb[0].mxu0 %v243
    %v929 = vpop.f32.mrb[0].mxu0
    %v930 = vadd.f32 %v889, %v929
    %v931 = vpop.f32.mrb[0].mxu0
    %v932 = vadd.f32 %v891, %v931
    %v933 = vpop.f32.mrb[0].mxu0
    %v934 = vpop.f32.mrb[0].mxu0
    %935 = vdwg.mxu0
    %936 = vmatprep.subr.bf16.mxu0 %v686
    %937 = vmatpush1.bf16.msra.mxu0 %v685
    %938 = vmatprep.subr.bf16.mxu0 %v688
    %939 = vmatpush1.bf16.msra.mxu0 %v687
    %940 = vmatprep.subr.bf16.mxu0 %v690
    %941 = vmatpush1.bf16.msra.mxu0 %v689
    %942 = vmatprep.subr.bf16.mxu0 %v692
    %943 = vmatpush1.bf16.msra.mxu0 %v691
    %944 = vmatprep.subr.bf16.mxu0 %v694
    %945 = vmatpush1.bf16.msra.mxu0 %v693
    %946 = vmatprep.subr.bf16.mxu0 %v696
    %947 = vmatpush1.bf16.msra.mxu0 %v695
    %948 = vmatprep.subr.bf16.mxu0 %v698
    %949 = vmatpush1.bf16.msra.mxu0 %v697
    %950 = vmatprep.subr.bf16.mxu0 %v700
    %951 = vmatpush1.bf16.msra.mxu0 %v699
    %952 = vmatprep.subr.bf16.mxu0 0
    %953 = vmatpush1.bf16.msra.mxu0 0
    %954 = vmatprep.subr.bf16.mxu0 0
    %955 = vmatpush1.bf16.msra.mxu0 0
    %956 = vmatprep.subr.bf16.mxu0 0
    %957 = vmatpush1.bf16.msra.mxu0 0
    %958 = vmatprep.subr.bf16.mxu0 0
    %959 = vmatpush1.bf16.msra.mxu0 0
    %960 = vmatprep.subr.bf16.mxu0 0
    %961 = vmatpush1.bf16.msra.mxu0 0
    %962 = vmatprep.subr.bf16.mxu0 0
    %963 = vmatpush1.bf16.msra.mxu0 0
    %964 = vmatprep.subr.bf16.mxu0 0
    %965 = vmatpush1.bf16.msra.mxu0 0
    %966 = vmatprep.subr.bf16.mxu0 0
    %967 = vmatpush1.bf16.msra.mxu0 0
    %968 = vmatprep.mubr.bf16.mxu0 0
    %969 = vmatmul.mubr.bf16.gmra.mrb[0].mxu0 %v245
    %v970 = vpop.f32.mrb[0].mxu0
    %v971 = vadd.f32 %v930, %v970
    %v972 = vpop.f32.mrb[0].mxu0
    %v973 = vadd.f32 %v932, %v972
    %v974 = vpop.f32.mrb[0].mxu0
    %v975 = vpop.f32.mrb[0].mxu0
    %976 = vdwg.mxu0
    %v977 = vmax.f32 %v971, 0.0
    %v978 = vmax.f32 %v973, 0.0
    %v979 = vpack.c.bf16 %v977, %v977
    %v980 = vpack.c.bf16 %v978, %v978
    %v981 = vld [vmem:[#allocation7] sm:$0xf]
    %v982 = vld [vmem:[#allocation7 + $0x4] sm:$0xf]
    %v983 = vld [vmem:[#allocation7 + $0x8] sm:$0xf]
    %v984 = vld [vmem:[#allocation7 + $0xc] sm:$0xf]
    %v985 = vld [vmem:[#allocation7 + $0x10] sm:$0xf]
    %v986 = vld [vmem:[#allocation7 + $0x14] sm:$0xf]
    %v987 = vld [vmem:[#allocation7 + $0x18] sm:$0xf]
    %v988 = vld [vmem:[#allocation7 + $0x1c] sm:$0xf]
    %v989 = vld [vmem:[#allocation7 + $0x20] sm:$0xf]
    %v990 = vld [vmem:[#allocation7 + $0x24] sm:$0xf]
    %v991 = vld [vmem:[#allocation7 + $0x28] sm:$0xf]
    %v992 = vld [vmem:[#allocation7 + $0x2c] sm:$0xf]
    %v993 = vld [vmem:[#allocation7 + $0x30] sm:$0xf]
    %v994 = vld [vmem:[#allocation7 + $0x34] sm:$0xf]
    %v995 = vld [vmem:[#allocation7 + $0x38] sm:$0xf]
    %v996 = vld [vmem:[#allocation7 + $0x3c] sm:$0xf]
    %v997 = vld [vmem:[#allocation7 + $0x40] sm:$0xf]
    %v998 = vld [vmem:[#allocation7 + $0x44] sm:$0xf]
    %v999 = vld [vmem:[#allocation7 + $0x48] sm:$0xf]
    %v1000 = vld [vmem:[#allocation7 + $0x4c] sm:$0xf]
    %v1001 = vld [vmem:[#allocation7 + $0x50] sm:$0xf]
    %v1002 = vld [vmem:[#allocation7 + $0x54] sm:$0xf]
    %v1003 = vld [vmem:[#allocation7 + $0x58] sm:$0xf]
    %v1004 = vld [vmem:[#allocation7 + $0x5c] sm:$0xf]
    %v1005 = vld [vmem:[#allocation7 + $0x60] sm:$0xf]
    %v1006 = vld [vmem:[#allocation7 + $0x64] sm:$0xf]
    %v1007 = vld [vmem:[#allocation7 + $0x68] sm:$0xf]
    %v1008 = vld [vmem:[#allocation7 + $0x6c] sm:$0xf]
    %v1009 = vld [vmem:[#allocation7 + $0x70] sm:$0xf]
    %v1010 = vld [vmem:[#allocation7 + $0x74] sm:$0xf]
    %v1011 = vld [vmem:[#allocation7 + $0x78] sm:$0xf]
    %v1012 = vld [vmem:[#allocation7 + $0x7c] sm:$0xf]
    %v1013 = vld [vmem:[%s4] sm:$0x1]
    %v1015 = vlaneseq
    %v1016 = vshrl.u32 %v1015, 7
    %v1017 = vsub.s32 0, %v1016
    %v1018 = vrot.slane %v1013, %v1017
    %v1052 = vunpack.c.l.b16 %v981
    %v1053 = vunpack.c.l.b16 %v982
    %v1054 = vunpack.c.l.b16 %v983
    %v1055 = vunpack.c.l.b16 %v984
    %v1056 = vunpack.c.l.b16 %v985
    %v1057 = vunpack.c.l.b16 %v986
    %v1058 = vunpack.c.l.b16 %v987
    %v1059 = vunpack.c.l.b16 %v988
    %v1060 = vunpack.c.l.b16 %v989
    %v1061 = vunpack.c.l.b16 %v990
    %v1062 = vunpack.c.l.b16 %v991
    %v1063 = vunpack.c.l.b16 %v992
    %v1064 = vunpack.c.l.b16 %v993
    %v1065 = vunpack.c.l.b16 %v994
    %v1066 = vunpack.c.l.b16 %v995
    %v1067 = vunpack.c.l.b16 %v996
    %v1068 = vunpack.c.l.b16 %v997
    %v1069 = vunpack.c.l.b16 %v998
    %v1070 = vunpack.c.l.b16 %v999
    %v1071 = vunpack.c.l.b16 %v1000
    %v1072 = vunpack.c.l.b16 %v1001
    %v1073 = vunpack.c.l.b16 %v1002
    %v1074 = vunpack.c.l.b16 %v1003
    %v1075 = vunpack.c.l.b16 %v1004
    %v1076 = vunpack.c.l.b16 %v1005
    %v1077 = vunpack.c.l.b16 %v1006
    %v1078 = vunpack.c.l.b16 %v1007
    %v1079 = vunpack.c.l.b16 %v1008
    %v1080 = vunpack.c.l.b16 %v1009
    %v1081 = vunpack.c.l.b16 %v1010
    %v1082 = vunpack.c.l.b16 %v1011
    %v1083 = vunpack.c.l.b16 %v1012
    %v1084 = vpack.c.b16 %v1053, %v1052
    %v1085 = vpack.c.b16 %v1055, %v1054
    %v1086 = vpack.c.b16 %v1057, %v1056
    %v1087 = vpack.c.b16 %v1059, %v1058
    %v1088 = vpack.c.b16 %v1061, %v1060
    %v1089 = vpack.c.b16 %v1063, %v1062
    %v1090 = vpack.c.b16 %v1065, %v1064
    %v1091 = vpack.c.b16 %v1067, %v1066
    %v1092 = vpack.c.b16 %v1069, %v1068
    %v1093 = vpack.c.b16 %v1071, %v1070
    %v1094 = vpack.c.b16 %v1073, %v1072
    %v1095 = vpack.c.b16 %v1075, %v1074
    %v1096 = vpack.c.b16 %v1077, %v1076
    %v1097 = vpack.c.b16 %v1079, %v1078
    %v1098 = vpack.c.b16 %v1081, %v1080
    %v1099 = vpack.c.b16 %v1083, %v1082
    %1116 = vmatprep.subr.bf16.mxu0 0
    %1117 = vmatpush1.bf16.msra.mxu0 %v1084
    %1118 = vmatprep.subr.bf16.mxu0 0
    %1119 = vmatpush1.bf16.msra.mxu0 %v1085
    %1120 = vmatprep.subr.bf16.mxu0 0
    %1121 = vmatpush1.bf16.msra.mxu0 %v1086
    %1122 = vmatprep.subr.bf16.mxu0 0
    %1123 = vmatpush1.bf16.msra.mxu0 %v1087
    %1124 = vmatprep.subr.bf16.mxu0 0
    %1125 = vmatpush1.bf16.msra.mxu0 %v1088
    %1126 = vmatprep.subr.bf16.mxu0 0
    %1127 = vmatpush1.bf16.msra.mxu0 %v1089
    %1128 = vmatprep.subr.bf16.mxu0 0
    %1129 = vmatpush1.bf16.msra.mxu0 %v1090
    %1130 = vmatprep.subr.bf16.mxu0 0
    %1131 = vmatpush1.bf16.msra.mxu0 %v1091
    %1132 = vmatprep.subr.bf16.mxu0 0
    %1133 = vmatpush1.bf16.msra.mxu0 %v1092
    %1134 = vmatprep.subr.bf16.mxu0 0
    %1135 = vmatpush1.bf16.msra.mxu0 %v1093
    %1136 = vmatprep.subr.bf16.mxu0 0
    %1137 = vmatpush1.bf16.msra.mxu0 %v1094
    %1138 = vmatprep.subr.bf16.mxu0 0
    %1139 = vmatpush1.bf16.msra.mxu0 %v1095
    %1140 = vmatprep.subr.bf16.mxu0 0
    %1141 = vmatpush1.bf16.msra.mxu0 %v1096
    %1142 = vmatprep.subr.bf16.mxu0 0
    %1143 = vmatpush1.bf16.msra.mxu0 %v1097
    %1144 = vmatprep.subr.bf16.mxu0 0
    %1145 = vmatpush1.bf16.msra.mxu0 %v1098
    %1146 = vmatprep.subr.bf16.mxu0 0
    %1147 = vmatpush1.bf16.msra.mxu0 %v1099
    %1148 = vmatprep.mubr.bf16.mxu0 %v980
    %1149 = vmatmul.mubr.bf16.gmra.mrb[0].mxu0 %v979
    %v1150 = vpop.f32.mrb[0].mxu0
    %v1151 = vadd.f32 %v1018, %v1150
    %v1152 = vpop.f32.mrb[0].mxu0
    %v1153 = vpop.f32.mrb[0].mxu0
    %v1154 = vpop.f32.mrb[0].mxu0
    %1155 = vdwg.mxu0
    %v1156 = vmax.f32 %v1151, 0.0
    %v1157 = vpack.c.bf16 %v1156, %v1156
    %v1158 = vld [vmem:[#allocation8] sm:$0xf]
    %v1159 = vld [vmem:[#allocation8 + $0x4] sm:$0xf]
    %v1160 = vld [vmem:[#allocation8 + $0x8] sm:$0xf]
    %v1161 = vld [vmem:[#allocation8 + $0xc] sm:$0xf]
    %v1162 = vld [vmem:[#allocation8 + $0x10] sm:$0xf]
    %v1163 = vld [vmem:[#allocation8 + $0x14] sm:$0xf]
    %v1164 = vld [vmem:[#allocation8 + $0x18] sm:$0xf]
    %v1165 = vld [vmem:[#allocation8 + $0x1c] sm:$0xf]
    %v1166 = vld [vmem:[#allocation8 + $0x20] sm:$0xf]
    %v1167 = vld [vmem:[#allocation8 + $0x24] sm:$0xf]
    %v1168 = vld [vmem:[#allocation8 + $0x28] sm:$0xf]
    %v1169 = vld [vmem:[#allocation8 + $0x2c] sm:$0xf]
    %v1170 = vld [vmem:[#allocation8 + $0x30] sm:$0xf]
    %v1171 = vld [vmem:[#allocation8 + $0x34] sm:$0xf]
    %v1172 = vld [vmem:[#allocation8 + $0x38] sm:$0xf]
    %v1173 = vld [vmem:[#allocation8 + $0x3c] sm:$0xf]
    %v1174 = vld [vmem:[%s6] sm:$0x1]
    %v1176 = vlaneseq
    %v1177 = vshrl.u32 %v1176, 7
    %v1178 = vsub.s32 0, %v1177
    %v1179 = vrot.slane %v1174, %v1178
    %v1197 = vunpack.c.l.b16 %v1158
    %v1198 = vunpack.c.l.b16 %v1159
    %v1199 = vunpack.c.l.b16 %v1160
    %v1200 = vunpack.c.l.b16 %v1161
    %v1201 = vunpack.c.l.b16 %v1162
    %v1202 = vunpack.c.l.b16 %v1163
    %v1203 = vunpack.c.l.b16 %v1164
    %v1204 = vunpack.c.l.b16 %v1165
    %v1205 = vunpack.c.l.b16 %v1166
    %v1206 = vunpack.c.l.b16 %v1167
    %v1207 = vunpack.c.l.b16 %v1168
    %v1208 = vunpack.c.l.b16 %v1169
    %v1209 = vunpack.c.l.b16 %v1170
    %v1210 = vunpack.c.l.b16 %v1171
    %v1211 = vunpack.c.l.b16 %v1172
    %v1212 = vunpack.c.l.b16 %v1173
    %v1213 = vpack.c.b16 %v1198, %v1197
    %v1214 = vpack.c.b16 %v1200, %v1199
    %v1215 = vpack.c.b16 %v1202, %v1201
    %v1216 = vpack.c.b16 %v1204, %v1203
    %v1217 = vpack.c.b16 %v1206, %v1205
    %v1218 = vpack.c.b16 %v1208, %v1207
    %v1219 = vpack.c.b16 %v1210, %v1209
    %v1220 = vpack.c.b16 %v1212, %v1211
    %1229 = vmatprep.subr.bf16.mxu0 0
    %1230 = vmatpush1.bf16.msra.mxu0 %v1213
    %1231 = vmatprep.subr.bf16.mxu0 0
    %1232 = vmatpush1.bf16.msra.mxu0 %v1214
    %1233 = vmatprep.subr.bf16.mxu0 0
    %1234 = vmatpush1.bf16.msra.mxu0 %v1215
    %1235 = vmatprep.subr.bf16.mxu0 0
    %1236 = vmatpush1.bf16.msra.mxu0 %v1216
    %1237 = vmatprep.subr.bf16.mxu0 0
    %1238 = vmatpush1.bf16.msra.mxu0 %v1217
    %1239 = vmatprep.subr.bf16.mxu0 0
    %1240 = vmatpush1.bf16.msra.mxu0 %v1218
    %1241 = vmatprep.subr.bf16.mxu0 0
    %1242 = vmatpush1.bf16.msra.mxu0 %v1219
    %1243 = vmatprep.subr.bf16.mxu0 0
    %1244 = vmatpush1.bf16.msra.mxu0 %v1220
    %1245 = vmatprep.subr.bf16.mxu0 0
    %1246 = vmatpush1.bf16.msra.mxu0 0
    %1247 = vmatprep.subr.bf16.mxu0 0
    %1248 = vmatpush1.bf16.msra.mxu0 0
    %1249 = vmatprep.subr.bf16.mxu0 0
    %1250 = vmatpush1.bf16.msra.mxu0 0
    %1251 = vmatprep.subr.bf16.mxu0 0
    %1252 = vmatpush1.bf16.msra.mxu0 0
    %1253 = vmatprep.subr.bf16.mxu0 0
    %1254 = vmatpush1.bf16.msra.mxu0 0
    %1255 = vmatprep.subr.bf16.mxu0 0
    %1256 = vmatpush1.bf16.msra.mxu0 0
    %1257 = vmatprep.subr.bf16.mxu0 0
    %1258 = vmatpush1.bf16.msra.mxu0 0
    %1259 = vmatprep.subr.bf16.mxu0 0
    %1260 = vmatpush1.bf16.msra.mxu0 0
    %1261 = vmatprep.mubr.bf16.mxu0 0
    %1262 = vmatmul.mubr.bf16.gmra.mrb[0].mxu0 %v1157
    %v1263 = vpop.f32.mrb[0].mxu0
    %v1264 = vadd.f32 %v1179, %v1263
    %v1265 = vpop.f32.mrb[0].mxu0
    %v1266 = vpop.f32.mrb[0].mxu0
    %v1267 = vpop.f32.mrb[0].mxu0
    %1268 = vdwg.mxu0
    %v1269 = vmax.f32 %v1264, 0.0
    %v1270 = vpack.c.bf16 %v1269, %v1269
    %v1271 = vld [vmem:[#allocation10] sm:$0xf]
    %v1272 = vld [vmem:[#allocation10 + $0x4] sm:$0xf]
    %v1273 = vld [vmem:[#allocation10 + $0x8] sm:$0xf]
    %v1274 = vld [vmem:[#allocation10 + $0xc] sm:$0xf]
    %v1275 = vld [vmem:[#allocation10 + $0x10] sm:$0xf]
    %v1276 = vld [vmem:[#allocation10 + $0x14] sm:$0xf]
    %v1277 = vld [vmem:[#allocation10 + $0x18] sm:$0xf]
    %v1278 = vld [vmem:[#allocation10 + $0x1c] sm:$0xf]
    %v1279 = vld [vmem:[#allocation10 + $0x20] sm:$0xf]
    %v1280 = vld [vmem:[#allocation10 + $0x24] sm:$0xf]
    %v1281 = vld [vmem:[#allocation10 + $0x28] sm:$0xf]
    %v1282 = vld [vmem:[#allocation10 + $0x2c] sm:$0xf]
    %v1283 = vld [vmem:[#allocation10 + $0x30] sm:$0xf]
    %v1284 = vld [vmem:[#allocation10 + $0x34] sm:$0xf]
    %v1285 = vld [vmem:[#allocation10 + $0x38] sm:$0xf]
    %v1286 = vld [vmem:[#allocation10 + $0x3c] sm:$0xf]
    %v1287 = vld [vmem:[%s8] sm:$0x1]
    %v1289 = vlaneseq
    %v1290 = vshrl.u32 %v1289, 7
    %v1291 = vsub.s32 0, %v1290
    %v1292 = vrot.slane %v1287, %v1291
    %v1310 = vunpack.c.l.b16 %v1271
    %v1311 = vunpack.c.l.b16 %v1272
    %v1312 = vunpack.c.l.b16 %v1273
    %v1313 = vunpack.c.l.b16 %v1274
    %v1314 = vunpack.c.l.b16 %v1275
    %v1315 = vunpack.c.l.b16 %v1276
    %v1316 = vunpack.c.l.b16 %v1277
    %v1317 = vunpack.c.l.b16 %v1278
    %v1318 = vunpack.c.l.b16 %v1279
    %v1319 = vunpack.c.l.b16 %v1280
    %v1320 = vunpack.c.l.b16 %v1281
    %v1321 = vunpack.c.l.b16 %v1282
    %v1322 = vunpack.c.l.b16 %v1283
    %v1323 = vunpack.c.l.b16 %v1284
    %v1324 = vunpack.c.l.b16 %v1285
    %v1325 = vunpack.c.l.b16 %v1286
    %v1326 = vpack.c.b16 %v1311, %v1310
    %v1327 = vpack.c.b16 %v1313, %v1312
    %v1328 = vpack.c.b16 %v1315, %v1314
    %v1329 = vpack.c.b16 %v1317, %v1316
    %v1330 = vpack.c.b16 %v1319, %v1318
    %v1331 = vpack.c.b16 %v1321, %v1320
    %v1332 = vpack.c.b16 %v1323, %v1322
    %v1333 = vpack.c.b16 %v1325, %v1324
    %1342 = vmatprep.subr.bf16.mxu0 0
    %1343 = vmatpush1.bf16.msra.mxu0 %v1326
    %1344 = vmatprep.subr.bf16.mxu0 0
    %1345 = vmatpush1.bf16.msra.mxu0 %v1327
    %1346 = vmatprep.subr.bf16.mxu0 0
    %1347 = vmatpush1.bf16.msra.mxu0 %v1328
    %1348 = vmatprep.subr.bf16.mxu0 0
    %1349 = vmatpush1.bf16.msra.mxu0 %v1329
    %1350 = vmatprep.subr.bf16.mxu0 0
    %1351 = vmatpush1.bf16.msra.mxu0 %v1330
    %1352 = vmatprep.subr.bf16.mxu0 0
    %1353 = vmatpush1.bf16.msra.mxu0 %v1331
    %1354 = vmatprep.subr.bf16.mxu0 0
    %1355 = vmatpush1.bf16.msra.mxu0 %v1332
    %1356 = vmatprep.subr.bf16.mxu0 0
    %1357 = vmatpush1.bf16.msra.mxu0 %v1333
    %1358 = vmatprep.subr.bf16.mxu0 0
    %1359 = vmatpush1.bf16.msra.mxu0 0
    %1360 = vmatprep.subr.bf16.mxu0 0
    %1361 = vmatpush1.bf16.msra.mxu0 0
    %1362 = vmatprep.subr.bf16.mxu0 0
    %1363 = vmatpush1.bf16.msra.mxu0 0
    %1364 = vmatprep.subr.bf16.mxu0 0
    %1365 = vmatpush1.bf16.msra.mxu0 0
    %1366 = vmatprep.subr.bf16.mxu0 0
    %1367 = vmatpush1.bf16.msra.mxu0 0
    %1368 = vmatprep.subr.bf16.mxu0 0
    %1369 = vmatpush1.bf16.msra.mxu0 0
    %1370 = vmatprep.subr.bf16.mxu0 0
    %1371 = vmatpush1.bf16.msra.mxu0 0
    %1372 = vmatprep.subr.bf16.mxu0 0
    %1373 = vmatpush1.bf16.msra.mxu0 0
    %1374 = vmatprep.mubr.bf16.mxu0 0
    %1375 = vmatmul.mubr.bf16.gmra.mrb[0].mxu0 %v1270
    %v1376 = vpop.f32.mrb[0].mxu0
    %v1377 = vadd.f32 %v1292, %v1376
    %v1378 = vpop.f32.mrb[0].mxu0
    %v1379 = vpop.f32.mrb[0].mxu0
    %v1380 = vpop.f32.mrb[0].mxu0
    %1381 = vdwg.mxu0
    %1382 = vst [vmem:[#allocation11] sm:$0xff] %v1377
    // Predicated region
    $region58: #{tpu_custom_call.1} parent=1 // pred_check
      _
    $region59: #{tpu_custom_call.1} parent=1 // pred_check_branch
      %1384 = sbr.rel (0) target = $region61
    $region60: #{tpu_custom_call.1} parent=1 // pred_region
      %s1386 = ssub.s32 128, 128
      %1387 = vsyncadd [#allocation4], %s1386
      %s1389 = sshll.u32 [#allocation11], 4
      %s1390 = int_to_ptr.vmem [resolvable:$true] %s1389
      %1392 = dma.vmem_to_hbm [thread:$0]  %s1390, 128, %s9, [#allocation4]
    $region61: #{tpu_custom_call.1} parent=1 // pred_fallthru
      _
    // Predicated region
    $region62: #{tpu_custom_call.1} parent=1 // pred_check
      _
    $region63: #{tpu_custom_call.1} parent=1 // pred_check_branch
      %1394 = sbr.rel (0) target = $region65
    $region64: #{tpu_custom_call.1} parent=1 // pred_region
      %1395 = dma.done [#allocation4], 128
    $region65: #{tpu_custom_call.1} parent=1 // pred_fallthru
      _
    %1396 = vsyncpa [#allocation3], 1
    %1397 = vsyncpa [#allocation6], 1
    %1398 = vsyncpa [#allocation9], 1
    %1399 = vsyncpa [#allocation4], 1

</llo_original>
